<compile_context>
chip_gen: v5e
topology: v5e:2x2
jax: 0.10.0
libtpu: 0.0.40
codegen_flags: <defaults>
</compile_context>

<pallas_src>
import math

import jax
import jax.numpy as jnp
from jax import lax
from jax.experimental import pallas as pl
from jax.experimental.pallas import tpu as pltpu

factors = [1, 1, 1, 1, 1 / 2, 1 / 4, 1 / 8, 1 / 16, 1 / 32]
LEAKY_SLOPE = 0.2
EPS = 1e-8

_VMEM_LIMIT = 32 * 1024 * 1024


def _cparams(semantics):
    return pltpu.CompilerParams(dimension_semantics=semantics,
                                vmem_limit_bytes=_VMEM_LIMIT)


# ----------------------------------------------------------------------------
# Kernel 1: initial latent projection
#   y = PixelNorm(z) @ (scale * W_convT_flat) + b ; LeakyReLU
# ----------------------------------------------------------------------------
def initial_projection(z, w_flat, b_flat):
    n, zd = z.shape
    cols = w_flat.shape[1]

    def kernel(z_ref, w_ref, b_ref, o_ref):
        zv = z_ref[...]
        zv = zv * lax.rsqrt(jnp.mean(zv * zv, axis=-1, keepdims=True) + EPS)
        y = jnp.dot(zv, w_ref[...], preferred_element_type=jnp.float32) + b_ref[...]
        o_ref[...] = jnp.where(y > 0, y, LEAKY_SLOPE * y)

    return pl.pallas_call(
        kernel,
        out_shape=jax.ShapeDtypeStruct((n, cols), jnp.float32),
        grid=(1,),
        in_specs=[pl.BlockSpec((n, zd), lambda i: (0, 0)),
                  pl.BlockSpec((zd, cols), lambda i: (0, 0)),
                  pl.BlockSpec((1, cols), lambda i: (0, 0))],
        out_specs=pl.BlockSpec((n, cols), lambda i: (0, 0)),
        compiler_params=_cparams(("arbitrary",)),
    )(z, w_flat, b_flat)


# ----------------------------------------------------------------------------
# Kernel 2: 3x3 WSConv2d on flattened (N, H*W, Cin) activations.
# The 9 taps are shifted slices of a flattened, zero-row-padded copy; left/right
# image-border taps are masked with an iota-derived column mask.  No im2col in HBM.
# ----------------------------------------------------------------------------
def conv3x3_flat(x_flat, w_oihw, bias, hh, ww, *, act_and_norm):
    n, p, cin = x_flat.shape
    assert p == hh * ww
    cout = w_oihw.shape[0]
    scale = math.sqrt(2.0 / (cin * 9))
    # (O,I,3,3) -> (3,3,I,O) -> (9,I,O), He scale folded into the weight (host side).
    w_taps = jnp.transpose(w_oihw, (2, 3, 1, 0)).reshape(9, cin, cout) * scale
    b2 = bias.reshape(1, cout)

    halo = ww + 1                                    # covers shifts up to +-(W+1)
    pad = jnp.zeros((n, halo, cin), jnp.float32)
    xpad = jnp.concatenate([pad, x_flat, pad], axis=1)   # (n, p + 2*halo, cin)
    ppad = p + 2 * halo
    taps = [(dy, dx) for dy in (-1, 0, 1) for dx in (-1, 0, 1)]

    # TODO(synk): for very large H*W, tile the image into row bands with a 1-row
    # halo (manual make_async_copy) instead of one full image per grid step.
    def kernel(x_ref, w_ref, b_ref, o_ref):
        xp = x_ref[...]                                              # (ppad, cin)
        col = lax.broadcasted_iota(jnp.int32, (p, 1), 0) % ww        # pixel column
        not_left = col != 0
        not_right = col != (ww - 1)
        acc = jnp.zeros((p, cout), jnp.float32)
        for t, (dy, dx) in enumerate(taps):
            start = halo + dy * ww + dx
            tap = xp[start:start + p, :]                             # (p, cin)
            if dx == -1:
                tap = jnp.where(not_left, tap, 0.0)
            elif dx == 1:
                tap = jnp.where(not_right, tap, 0.0)
            acc = acc + jnp.dot(tap, w_ref[t], preferred_element_type=jnp.float32)
        y = acc + b_ref[...]
        if act_and_norm:
            y = jnp.where(y > 0, y, LEAKY_SLOPE * y)
            y = y * lax.rsqrt(jnp.mean(y * y, axis=-1, keepdims=True) + EPS)
        o_ref[...] = y

    return pl.pallas_call(
        kernel,
        out_shape=jax.ShapeDtypeStruct((n, p, cout), jnp.float32),
        grid=(n,),
        in_specs=[pl.BlockSpec((None, ppad, cin), lambda i: (i, 0, 0)),
                  pl.BlockSpec((9, cin, cout), lambda i: (0, 0, 0)),
                  pl.BlockSpec((1, cout), lambda i: (0, 0))],
        out_specs=pl.BlockSpec((None, p, cout), lambda i: (i, 0, 0)),
        compiler_params=_cparams(("parallel",)),
    )(xpad, w_taps, b2)


# ----------------------------------------------------------------------------
# Kernel 3: fused tail -- rgb(out), rgb(prev), nearest-2x upsample of the low-res
# RGB, alpha blend, tanh.  Output is channels-first (N, 3, H*W): lane-dense stores
# and directly reshapeable to NCHW.
# ----------------------------------------------------------------------------
def rgb_fade(out_flat, prev_flat, w_out, b_out, w_prev, b_prev, alpha, hh, ww):
    n, p_full, cout = out_flat.shape
    _, p_half, cprev = prev_flat.shape
    assert 4 * p_half == p_full
    img_c = w_out.shape[0]
    wo = w_out.reshape(img_c, cout) * math.sqrt(2.0 / cout)      # He scale folded in
    wp = w_prev.reshape(img_c, cprev) * math.sqrt(2.0 / cprev)
    bo = b_out.reshape(img_c, 1)
    bp = b_prev.reshape(img_c, 1)
    w_half = ww // 2

    def kernel(hi_ref, lo_ref, wo_ref, wp_ref, bo_ref, bp_ref, o_ref):
        gen = jnp.einsum('kc,pc->kp', wo_ref[...], hi_ref[...],
                         preferred_element_type=jnp.float32) + bo_ref[...]   # (3, P)
        low = jnp.einsum('kc,pc->kp', wp_ref[...], lo_ref[...],
                         preferred_element_type=jnp.float32) + bp_ref[...]   # (3, p)
        # nearest-2x upsample of the 3-channel low-res RGB via a 0/1 gather matmul.
        po = lax.broadcasted_iota(jnp.int32, (p_half, p_full), 1)
        pi = lax.broadcasted_iota(jnp.int32, (p_half, p_full), 0)
        src = ((po // ww) // 2) * w_half + (po % ww) // 2
        gather = (pi == src).astype(jnp.float32)                             # (p, P)
        up = jnp.dot(low, gather, preferred_element_type=jnp.float32)        # (3, P)
        o_ref[...] = jnp.tanh(alpha * gen + (1.0 - alpha) * up)

    return pl.pallas_call(
        kernel,
        out_shape=jax.ShapeDtypeStruct((n, img_c, p_full), jnp.float32),
        grid=(n,),
        in_specs=[pl.BlockSpec((None, p_full, cout), lambda i: (i, 0, 0)),
                  pl.BlockSpec((None, p_half, cprev), lambda i: (i, 0, 0)),
                  pl.BlockSpec((img_c, cout), lambda i: (0, 0)),
                  pl.BlockSpec((img_c, cprev), lambda i: (0, 0)),
                  pl.BlockSpec((img_c, 1), lambda i: (0, 0)),
                  pl.BlockSpec((img_c, 1), lambda i: (0, 0))],
        out_specs=pl.BlockSpec((None, img_c, p_full), lambda i: (i, 0, 0)),
        compiler_params=_cparams(("parallel",)),
    )(out_flat, prev_flat, wo, wp, bo, bp)


# ----------------------------------------------------------------------------
# Kernel 4: steps == 0 path (initial_rgb only, no fade / tanh).
# ----------------------------------------------------------------------------
def rgb_only(x_flat, w_rgb, b_rgb):
    n, p, c = x_flat.shape
    img_c = w_rgb.shape[0]
    wf = w_rgb.reshape(img_c, c) * math.sqrt(2.0 / c)
    bf = b_rgb.reshape(img_c, 1)

    def kernel(x_ref, w_ref, b_ref, o_ref):
        o_ref[...] = jnp.einsum('kc,pc->kp', w_ref[...], x_ref[...],
                                preferred_element_type=jnp.float32) + b_ref[...]

    return pl.pallas_call(
        kernel,
        out_shape=jax.ShapeDtypeStruct((n, img_c, p), jnp.float32),
        grid=(n,),
        in_specs=[pl.BlockSpec((None, p, c), lambda i: (i, 0, 0)),
                  pl.BlockSpec((img_c, c), lambda i: (0, 0)),
                  pl.BlockSpec((img_c, 1), lambda i: (0, 0))],
        out_specs=pl.BlockSpec((None, img_c, p), lambda i: (i, 0, 0)),
        compiler_params=_cparams(("parallel",)),
    )(x_flat, wf, bf)


# ----------------------------------------------------------------------------
# Glue
# ----------------------------------------------------------------------------
def upsample2x_flat(x_flat, hh, ww):
    # TODO(synk): fuse the nearest-2x upsample into the following conv kernel
    # (4-phase upsample+conv decomposition) to avoid this HBM round trip.
    n, p, c = x_flat.shape
    x = x_flat.reshape(n, hh, ww, c)
    x = jnp.repeat(jnp.repeat(x, 2, axis=1), 2, axis=2)
    return x.reshape(n, 4 * p, c)


# ----------------------------------------------------------------------------
# Parameters (deterministic synthetic init, mirrors the PyTorch __init__ shapes)
# ----------------------------------------------------------------------------
def init_params(key, z_dim, in_channels, img_channels=3):
    keys = iter(jax.random.split(key, 64))
    nrm = lambda shape: jax.random.normal(next(keys), shape, jnp.float32)
    p = {
        'init_ct_w': nrm((z_dim, in_channels, 4, 4)),   # ConvTranspose2d (in,out,kH,kW)
        'init_ct_b': jnp.zeros((in_channels,), jnp.float32),
        'init_conv_w': nrm((in_channels, in_channels, 3, 3)),
        'init_conv_b': jnp.zeros((in_channels,), jnp.float32),
        'blocks': [],
        'rgb': [{'w': nrm((img_channels, in_channels, 1, 1)),
                 'b': jnp.zeros((img_channels,), jnp.float32)}],
    }
    for i in range(len(factors) - 1):
        cin = int(in_channels * factors[i])
        cout = int(in_channels * factors[i + 1])
        p['blocks'].append({
            'c1_w': nrm((cout, cin, 3, 3)), 'c1_b': jnp.zeros((cout,), jnp.float32),
            'c2_w': nrm((cout, cout, 3, 3)), 'c2_b': jnp.zeros((cout,), jnp.float32),
        })
        p['rgb'].append({'w': nrm((img_channels, cout, 1, 1)),
                         'b': jnp.zeros((img_channels,), jnp.float32)})
    return p


# ----------------------------------------------------------------------------
# Generator forward (Pallas path)
# ----------------------------------------------------------------------------
def generator_pallas(params, x, alpha, steps, z_dim, in_channels):
    # TODO(synk): inter-layer activations could be carried as bf16 to halve HBM
    # traffic; kept f32 here to preserve the module's numerics exactly.
    n = x.shape[0]
    c = in_channels
    z = x.reshape(n, z_dim)

    # initial: PixelNorm -> WSConvTranspose2d(z, C, 4, 1, 0) -> LeakyReLU
    ct_scale = math.sqrt(2.0 / (z_dim * 16))
    wf = jnp.transpose(params['init_ct_w'], (0, 2, 3, 1)).reshape(z_dim, 16 * c) * ct_scale
    bf = jnp.tile(params['init_ct_b'], 16).reshape(1, 16 * c)
    out = initial_projection(z, wf, bf).reshape(n, 16, c)          # flattened 4x4

    # initial: WSConv2d 3x3 -> LeakyReLU -> PixelNorm
    hh = ww = 4
    out = conv3x3_flat(out, params['init_conv_w'], params['init_conv_b'], hh, ww,
                       act_and_norm=True)

    if steps == 0:
        rgb = params['rgb'][0]
        y = rgb_only(out, rgb['w'], rgb['b'])
        return y.reshape(n, y.shape[1], hh, ww)

    prev = out
    for step in range(steps):
        prev = out                                   # activation before the upsample
        up = upsample2x_flat(out, hh, ww)
        hh, ww = 2 * hh, 2 * ww
        blk = params['blocks'][step]
        out = conv3x3_flat(up, blk['c1_w'], blk['c1_b'], hh, ww, act_and_norm=True)
        out = conv3x3_flat(out, blk['c2_w'], blk['c2_b'], hh, ww, act_and_norm=True)

    rgb_hi = params['rgb'][steps]
    rgb_lo = params['rgb'][steps - 1]
    y = rgb_fade(out, prev, rgb_hi['w'], rgb_hi['b'], rgb_lo['w'], rgb_lo['b'],
                 float(alpha), hh, ww)
    return y.reshape(n, y.shape[1], hh, ww)          # already NCHW-ordered


# ----------------------------------------------------------------------------
# Pure-JAX reference (mirrors the PyTorch module, NCHW) for correctness check
# ----------------------------------------------------------------------------
def generator_ref(params, x, alpha, steps):
    def pixelnorm(v):
        return v / jnp.sqrt(jnp.mean(v * v, axis=1, keepdims=True) + EPS)

    def lrelu(v):
        return jnp.where(v > 0, v, LEAKY_SLOPE * v)

    def wsconv(v, w, b, padding):
        cin, k = w.shape[1], w.shape[2]
        scale = math.sqrt(2.0 / (cin * k * k))
        y = jax.lax.conv_general_dilated(
            v * scale, w, window_strides=(1, 1),
            padding=[(padding, padding), (padding, padding)],
            dimension_numbers=('NCHW', 'OIHW', 'NCHW'))
        return y + b.reshape(1, -1, 1, 1)

    def wsconv_t(v, w, b):
        z, k = w.shape[0], w.shape[2]
        scale = math.sqrt(2.0 / (z * k * k))
        y = jnp.einsum('nz,zoij->noij', v[:, :, 0, 0] * scale, w)
        return y + b.reshape(1, -1, 1, 1)

    out = pixelnorm(x)
    out = lrelu(wsconv_t(out, params['init_ct_w'], params['init_ct_b']))
    out = pixelnorm(lrelu(wsconv(out, params['init_conv_w'], params['init_conv_b'], 1)))
    if steps == 0:
        return wsconv(out, params['rgb'][0]['w'], params['rgb'][0]['b'], 0)
    upscaled = out
    for step in range(steps):
        upscaled = jnp.repeat(jnp.repeat(out, 2, axis=2), 2, axis=3)
        blk = params['blocks'][step]
        out = pixelnorm(lrelu(wsconv(upscaled, blk['c1_w'], blk['c1_b'], 1)))
        out = pixelnorm(lrelu(wsconv(out, blk['c2_w'], blk['c2_b'], 1)))
    fu = wsconv(upscaled, params['rgb'][steps - 1]['w'], params['rgb'][steps - 1]['b'], 0)
    fo = wsconv(out, params['rgb'][steps]['w'], params['rgb'][steps]['b'], 0)
    return jnp.tanh(alpha * fo + (1 - alpha) * fu)


# ----------------------------------------------------------------------------
if __name__ == "__main__":
    z_dim, in_channels, img_channels = 32, 32, 3
    batch, steps, alpha = 2, 2, 0.6

    key = jax.random.PRNGKey(0)
    kp, kx = jax.random.split(key)
    params = init_params(kp, z_dim, in_channels, img_channels)
    x = jax.random.normal(kx, (batch, z_dim, 1, 1), jnp.float32)   # NCHW latent

    out = generator_pallas(params, x, alpha, steps, z_dim, in_channels)
    out = jax.block_until_ready(out)

    ref = generator_ref(params, x, alpha, steps)
    assert out.shape == (batch, img_channels, 4 * 2 ** steps, 4 * 2 ** steps), out.shape
    max_err = float(jnp.max(jnp.abs(out - ref)))
    assert jnp.allclose(out, ref, rtol=1e-3, atol=1e-4), f"max abs err {max_err}"

    print("KERNEL_OK")
</pallas_src>

<mosaic_0001>
module attributes {stable_mosaic.version = 11 : i64} {
  func.func @kernel(%arg0: i32, %arg1: memref<2x32xf32, #tpu.memory_space<vmem>>, %arg2: memref<32x512xf32, #tpu.memory_space<vmem>>, %arg3: memref<1x512xf32, #tpu.memory_space<vmem>>, %arg4: memref<2x512xf32, #tpu.memory_space<vmem>>) attributes {dimension_semantics = [#tpu.dimension_semantics<arbitrary>], iteration_bounds = array<i64: 1>, scalar_prefetch = 0 : i64, scratch_operands = 0 : i64, tpu.core_type = #tpu.core_type<tc>, window_params = [{pipeline_mode = #tpu.pipeline_mode<synchronous>, transform_indices = @transform_0, window_bounds = array<i64: 2, 32>}, {pipeline_mode = #tpu.pipeline_mode<synchronous>, transform_indices = @transform_1, window_bounds = array<i64: 32, 512>}, {pipeline_mode = #tpu.pipeline_mode<synchronous>, transform_indices = @transform_2, window_bounds = array<i64: 1, 512>}, {pipeline_mode = #tpu.pipeline_mode<synchronous>, transform_indices = @transform_3, window_bounds = array<i64: 2, 512>}]} {
    %c0 = arith.constant 0 : index
    %c0_0 = arith.constant 0 : index
    %0 = vector.load %arg1[%c0, %c0_0] : memref<2x32xf32, #tpu.memory_space<vmem>>, vector<2x32xf32>
    %1 = arith.mulf %0, %0 : vector<2x32xf32>
    %cst = arith.constant dense<0.000000e+00> : vector<2xf32>
    %2 = vector.multi_reduction <add>, %1, %cst [1] : vector<2x32xf32> to vector<2xf32>
    %3 = vector.shape_cast %2 : vector<2xf32> to vector<2x1xf32>
    %cst_1 = arith.constant 3.200000e+01 : f32
    %4 = vector.broadcast %cst_1 : f32 to vector<2x1xf32>
    %5 = arith.divf %3, %4 : vector<2x1xf32>
    %cst_2 = arith.constant 9.99999993E-9 : f32
    %6 = vector.broadcast %cst_2 : f32 to vector<2x1xf32>
    %7 = arith.addf %5, %6 : vector<2x1xf32>
    %8 = math.rsqrt %7 : vector<2x1xf32>
    %9 = vector.broadcast %8 : vector<2x1xf32> to vector<2x32xf32>
    %10 = arith.mulf %0, %9 : vector<2x32xf32>
    %c0_3 = arith.constant 0 : index
    %c0_4 = arith.constant 0 : index
    %11 = vector.load %arg2[%c0_3, %c0_4] : memref<32x512xf32, #tpu.memory_space<vmem>>, vector<32x512xf32>
    %cst_5 = arith.constant dense<0.000000e+00> : vector<2x512xf32>
    %12 = tpu.matmul %10, %11, %cst_5 {dimension_numbers = #tpu.dot_dimension_numbers<[1], [0], [0], [1], [0, 0, 1, 1], [], []>} : vector<2x32xf32>, vector<32x512xf32>, vector<2x512xf32> -> vector<2x512xf32>
    %c0_6 = arith.constant 0 : index
    %c0_7 = arith.constant 0 : index
    %13 = vector.load %arg3[%c0_6, %c0_7] : memref<1x512xf32, #tpu.memory_space<vmem>>, vector<1x512xf32>
    %14 = vector.broadcast %13 : vector<1x512xf32> to vector<2x512xf32>
    %15 = arith.addf %12, %14 : vector<2x512xf32>
    %cst_8 = arith.constant 0.000000e+00 : f32
    %16 = vector.broadcast %cst_8 : f32 to vector<2x512xf32>
    %17 = arith.cmpf ogt, %15, %16 : vector<2x512xf32>
    %cst_9 = arith.constant 2.000000e-01 : f32
    %18 = vector.broadcast %cst_9 : f32 to vector<2x512xf32>
    %19 = arith.mulf %18, %15 : vector<2x512xf32>
    %20 = arith.select %17, %15, %19 : vector<2x512xi1>, vector<2x512xf32>
    %c0_10 = arith.constant 0 : index
    %c0_11 = arith.constant 0 : index
    %21 = vector.load %arg4[%c0_10, %c0_11] : memref<2x512xf32, #tpu.memory_space<vmem>>, vector<2x512xf32>
    tpu.vector_store %arg4[%c0_10, %c0_11], %20 {strides = array<i32>} : memref<2x512xf32, #tpu.memory_space<vmem>>, vector<2x512xf32>,
    return
  }
  func.func @transform_0(%arg0: i32) -> (i32, i32) {
    %c0_i32 = arith.constant 0 : i32
    %c0_i32_0 = arith.constant 0 : i32
    %c0_i32_1 = arith.constant 0 : i32
    return %c0_i32, %c0_i32_0 : i32, i32
  }
  func.func @transform_1(%arg0: i32) -> (i32, i32) {
    %c0_i32 = arith.constant 0 : i32
    %c0_i32_0 = arith.constant 0 : i32
    %c0_i32_1 = arith.constant 0 : i32
    return %c0_i32, %c0_i32_0 : i32, i32
  }
  func.func @transform_2(%arg0: i32) -> (i32, i32) {
    %c0_i32 = arith.constant 0 : i32
    %c0_i32_0 = arith.constant 0 : i32
    %c0_i32_1 = arith.constant 0 : i32
    return %c0_i32, %c0_i32_0 : i32, i32
  }
  func.func @transform_3(%arg0: i32) -> (i32, i32) {
    %c0_i32 = arith.constant 0 : i32
    %c0_i32_0 = arith.constant 0 : i32
    %c0_i32_1 = arith.constant 0 : i32
    return %c0_i32, %c0_i32_0 : i32, i32
  }
}

</mosaic_0001>

<llo_original>
// kernel: tpu_custom_call.1
$region0: #{tpu_custom_call.1}
  #allocation0 [shape = 'u32[]', space=smem, size = 0x4, offset = 0x4, fixed_abs, tag = 'smem constant byte address 0x4 - core index']
  #allocation1 [shape = 'u32[72,128]{1,0:T(1,128)}', space=vmem, size = 0x9000, scoped, tag = 'internal scratch']
  %s0 = inlined_call_operand.hbm [shape: f32[2,32], index: 0, kind: input, shape index: {}]
  %s1 = inlined_call_operand.hbm [shape: f32[32,512], index: 1, kind: input, shape index: {}]
  %s2 = inlined_call_operand.hbm [shape: f32[1,512], index: 2, kind: input, shape index: {}]
  %s3 = inlined_call_operand.hbm [shape: f32[2,512], index: 3, kind: output, shape index: {}]
  %s4 = sld [smem:[#allocation0]]
  $region34: #{tpu_custom_call.1} parent=0
    _
  %s6 = ssub.s32 1, %s4
  %s7 = scalar_select 0, %s6, %s4
  $region1: #{tpu_custom_call.1} parent=0
    #allocation2 [shape = 'u8[1024]{0}', space=vmem, size = 0x400, scoped, tag = 'input window, operand 0, single buffered']
    #allocation3 [shape = 's32[1]{0}', space=sflag, size = 0x4, scoped, tag = 'scoped memory for tpu_custom_call.1']
    #allocation4 [shape = 's32[1]{0}', space=sflag, size = 0x4, scoped, tag = 'scoped memory for tpu_custom_call.1']
    #allocation5 [shape = 'u8[65536]{0}', space=vmem, size = 0x10000, scoped, tag = 'input window, operand 1, single buffered']
    #allocation6 [shape = 's32[1]{0}', space=sflag, size = 0x4, scoped, tag = 'scoped memory for tpu_custom_call.1']
    #allocation7 [shape = 'u8[2048]{0}', space=vmem, size = 0x800, scoped, tag = 'input window, operand 2, single buffered']
    #allocation8 [shape = 'u8[4096]{0}', space=vmem, size = 0x1000, scoped, tag = 'output window, operand 0, single buffered']
    %8 = vsyncpa [#allocation3], 0
    %9 = vsyncpa [#allocation6], 0
    %10 = vsyncpa [#allocation4], 0
    // Predicated region
    $region2: #{tpu_custom_call.1} parent=1 // pred_check
      _
    $region3: #{tpu_custom_call.1} parent=1 // pred_check_branch
      %12 = sbr.rel (0) target = $region5
    $region4: #{tpu_custom_call.1} parent=1 // pred_region
      %14 = vsyncadd [#allocation3], 0
      %s16 = sshll.u32 %s0, 4
      %s17 = int_to_ptr.hbm [resolvable:$true] %s16
      %s18 = sshll.u32 [#allocation2], 4
      %s19 = int_to_ptr.vmem [resolvable:$true] %s18
      %21 = dma.hbm_to_vmem [thread:$0]  %s17, 32, %s19, [#allocation3]
    $region5: #{tpu_custom_call.1} parent=1 // pred_fallthru
      _
    // Predicated region
    $region6: #{tpu_custom_call.1} parent=1 // pred_check
      _
    $region7: #{tpu_custom_call.1} parent=1 // pred_check_branch
      %23 = sbr.rel (0) target = $region9
    $region8: #{tpu_custom_call.1} parent=1 // pred_region
      %25 = vsyncadd [#allocation6], 0
      %s26 = sshll.u32 %s1, 4
      %s27 = int_to_ptr.hbm [resolvable:$true] %s26
      %s28 = sshll.u32 [#allocation5], 4
      %s29 = int_to_ptr.vmem [resolvable:$true] %s28
      %34 = dma.hbm_to_vmem [thread:$0]  %s27, 2048, %s29, [#allocation6], 512, 512, 32
    $region9: #{tpu_custom_call.1} parent=1 // pred_fallthru
      _
    // Predicated region
    $region10: #{tpu_custom_call.1} parent=1 // pred_check
      _
    $region11: #{tpu_custom_call.1} parent=1 // pred_check_branch
      %36 = sbr.rel (0) target = $region13
    $region12: #{tpu_custom_call.1} parent=1 // pred_region
      %38 = vsyncadd [#allocation6], 0
      %s40 = sshll.u32 %s2, 4
      %s41 = int_to_ptr.hbm [resolvable:$true] %s40
      %s42 = sshll.u32 [#allocation7], 4
      %s43 = int_to_ptr.vmem [resolvable:$true] %s42
      %45 = dma.hbm_to_vmem [thread:$0]  %s41, 64, %s43, [#allocation6]
    $region13: #{tpu_custom_call.1} parent=1 // pred_fallthru
      _
    // Predicated region
    $region14: #{tpu_custom_call.1} parent=1 // pred_check
      _
    $region15: #{tpu_custom_call.1} parent=1 // pred_check_branch
      %47 = sbr.rel (0) target = $region17
    $region16: #{tpu_custom_call.1} parent=1 // pred_region
      %49 = dma.done [#allocation3], 32
    $region17: #{tpu_custom_call.1} parent=1 // pred_fallthru
      _
    // Predicated region
    $region18: #{tpu_custom_call.1} parent=1 // pred_check
      _
    $region19: #{tpu_custom_call.1} parent=1 // pred_check_branch
      %51 = sbr.rel (0) target = $region21
    $region20: #{tpu_custom_call.1} parent=1 // pred_region
      %53 = dma.done [#allocation6], 2048
    $region21: #{tpu_custom_call.1} parent=1 // pred_fallthru
      _
    // Predicated region
    $region22: #{tpu_custom_call.1} parent=1 // pred_check
      _
    $region23: #{tpu_custom_call.1} parent=1 // pred_check_branch
      %55 = sbr.rel (0) target = $region25
    $region24: #{tpu_custom_call.1} parent=1 // pred_region
      %57 = dma.done [#allocation6], 64
    $region25: #{tpu_custom_call.1} parent=1 // pred_fallthru
      _
    %v58 = vld [vmem:[#allocation2] sm:$0x3]
    %v59 = vmul.f32 %v58, %v58
    %vm60 = vcmask 254976
    %v61 = vsel %vm60, %v59, 0.0
    %62 = vadd.xlane.f32.xlu0 %v61
    %v63 = vpop.xlane.xlu0 %62
    %v64 = vrcp.pop 32.0
    %v65 = vmul.f32 32.0, %v64
    %v66 = vsub.f32 1.0, %v65
    %v67 = vmul.f32 %v64, %v66
    %v68 = vadd.f32 %v64, %v67
    %vm69 = vweird.f32 %v64
    %v70 = vsel %vm69, %v64, %v68
    %v71 = vmul.f32 %v63, %v70
    %v72 = vadd.f32 %v71, 1e-08
    %v73 = vrsqrt.pop %v72
    %v74 = vmul.f32 %v73, %v72
    %v75 = vmul.f32 %v74, %v73
    %v76 = vmul.f32 0.5, %v75
    %v77 = vsub.f32 1.5, %v76
    %v78 = vmul.f32 %v73, %v77
    %vm79 = vweird.f32 %v72
    %vm80 = vweird.f32 %v73
    %vm81 = vmor %vm79, %vm80
    %v82 = vsel %vm81, %v73, %v78
    %v83 = vmul.f32 %v58, %v82
    %v84 = vld [vmem:[#allocation5] sm:$0xff]
    %v85 = vld [vmem:[#allocation5 + $0x8] sm:$0xff]
    %v86 = vld [vmem:[#allocation5 + $0x10] sm:$0xff]
    %v87 = vld [vmem:[#allocation5 + $0x18] sm:$0xff]
    %v88 = vld [vmem:[#allocation5 + $0x20] sm:$0xff]
    %v89 = vld [vmem:[#allocation5 + $0x28] sm:$0xff]
    %v90 = vld [vmem:[#allocation5 + $0x30] sm:$0xff]
    %v91 = vld [vmem:[#allocation5 + $0x38] sm:$0xff]
    %v92 = vld [vmem:[#allocation5 + $0x40] sm:$0xff]
    %v93 = vld [vmem:[#allocation5 + $0x48] sm:$0xff]
    %v94 = vld [vmem:[#allocation5 + $0x50] sm:$0xff]
    %v95 = vld [vmem:[#allocation5 + $0x58] sm:$0xff]
    %v96 = vld [vmem:[#allocation5 + $0x60] sm:$0xff]
    %v97 = vld [vmem:[#allocation5 + $0x68] sm:$0xff]
    %v98 = vld [vmem:[#allocation5 + $0x70] sm:$0xff]
    %v99 = vld [vmem:[#allocation5 + $0x78] sm:$0xff]
    %v100 = vld [vmem:[#allocation7] sm:$0xf]
    %v102 = vperm.slane %v100, 0
    %v103 = vperm.slane %v100, 1
    %v104 = vperm.slane %v100, 2
    %v105 = vperm.slane %v100, 3
    %vm110 = vcmask 261120
    %v112 = vsel %vm110, %v83, 0
    %114 = vmatpush.msra.mxu0 0.0
    %115 = vmatpush.msra.mxu0 0.0
    %116 = vmatpush.msra.mxu0 0.0
    %117 = vmatpush.msra.mxu0 0.0
    %118 = vmatpush.msra.mxu0 0.0
    %119 = vmatpush.msra.mxu0 0.0
    %120 = vmatpush.msra.mxu0 0.0
    %121 = vmatpush.msra.mxu0 0.0
    %122 = vmatpush.msra.mxu0 0.0
    %123 = vmatpush.msra.mxu0 0.0
    %124 = vmatpush.msra.mxu0 0.0
    %125 = vmatpush.msra.mxu0 0.0
    %126 = vmatpush.msra.mxu0 %v96
    %127 = vmatpush.msra.mxu0 %v92
    %128 = vmatpush.msra.mxu0 %v88
    %129 = vmatpush.msra.mxu0 %v84
    %130 = vmatmul.f32.gmra.mxu0 %v112
    %v131 = vpop.f32.mrf.mxu0
    %v132 = vadd.f32 %v102, %v131
    %133 = vdwg.mxu0
    %134 = vmatpush.msra.mxu0 0.0
    %135 = vmatpush.msra.mxu0 0.0
    %136 = vmatpush.msra.mxu0 0.0
    %137 = vmatpush.msra.mxu0 0.0
    %138 = vmatpush.msra.mxu0 0.0
    %139 = vmatpush.msra.mxu0 0.0
    %140 = vmatpush.msra.mxu0 0.0
    %141 = vmatpush.msra.mxu0 0.0
    %142 = vmatpush.msra.mxu0 0.0
    %143 = vmatpush.msra.mxu0 0.0
    %144 = vmatpush.msra.mxu0 0.0
    %145 = vmatpush.msra.mxu0 0.0
    %146 = vmatpush.msra.mxu0 %v97
    %147 = vmatpush.msra.mxu0 %v93
    %148 = vmatpush.msra.mxu0 %v89
    %149 = vmatpush.msra.mxu0 %v85
    %150 = vmatmul.f32.gmra.mxu0 %v112
    %v151 = vpop.f32.mrf.mxu0
    %v152 = vadd.f32 %v103, %v151
    %153 = vdwg.mxu0
    %154 = vmatpush.msra.mxu0 0.0
    %155 = vmatpush.msra.mxu0 0.0
    %156 = vmatpush.msra.mxu0 0.0
    %157 = vmatpush.msra.mxu0 0.0
    %158 = vmatpush.msra.mxu0 0.0
    %159 = vmatpush.msra.mxu0 0.0
    %160 = vmatpush.msra.mxu0 0.0
    %161 = vmatpush.msra.mxu0 0.0
    %162 = vmatpush.msra.mxu0 0.0
    %163 = vmatpush.msra.mxu0 0.0
    %164 = vmatpush.msra.mxu0 0.0
    %165 = vmatpush.msra.mxu0 0.0
    %166 = vmatpush.msra.mxu0 %v98
    %167 = vmatpush.msra.mxu0 %v94
    %168 = vmatpush.msra.mxu0 %v90
    %169 = vmatpush.msra.mxu0 %v86
    %170 = vmatmul.f32.gmra.mxu0 %v112
    %v171 = vpop.f32.mrf.mxu0
    %v172 = vadd.f32 %v104, %v171
    %173 = vdwg.mxu0
    %174 = vmatpush.msra.mxu0 0.0
    %175 = vmatpush.msra.mxu0 0.0
    %176 = vmatpush.msra.mxu0 0.0
    %177 = vmatpush.msra.mxu0 0.0
    %178 = vmatpush.msra.mxu0 0.0
    %179 = vmatpush.msra.mxu0 0.0
    %180 = vmatpush.msra.mxu0 0.0
    %181 = vmatpush.msra.mxu0 0.0
    %182 = vmatpush.msra.mxu0 0.0
    %183 = vmatpush.msra.mxu0 0.0
    %184 = vmatpush.msra.mxu0 0.0
    %185 = vmatpush.msra.mxu0 0.0
    %186 = vmatpush.msra.mxu0 %v99
    %187 = vmatpush.msra.mxu0 %v95
    %188 = vmatpush.msra.mxu0 %v91
    %189 = vmatpush.msra.mxu0 %v87
    %190 = vmatmul.f32.gmra.mxu0 %v112
    %v191 = vpop.f32.mrf.mxu0
    %v192 = vadd.f32 %v105, %v191
    %193 = vdwg.mxu0
    %vm194 = vcmp.gt.f32.partialorder %v132, 0.0
    %vm195 = vcmp.gt.f32.partialorder %v152, 0.0
    %vm196 = vcmp.gt.f32.partialorder %v172, 0.0
    %vm197 = vcmp.gt.f32.partialorder %v192, 0.0
    %v198 = vmul.f32 %v132, 0.2
    %v199 = vmul.f32 %v152, 0.2
    %v200 = vmul.f32 %v172, 0.2
    %v201 = vmul.f32 %v192, 0.2
    %v202 = vsel %vm194, %v132, %v198
    %v203 = vsel %vm195, %v152, %v199
    %v204 = vsel %vm196, %v172, %v200
    %v205 = vsel %vm197, %v192, %v201
    %v210 = vrot.slane %v203, 6
    %v211 = vrot.slane %v204, 4
    %v212 = vrot.slane %v205, 2
    %vm213 = vcmask 1041408
    %v214 = vsel %vm213, %v202, %v210
    %vm215 = vcmask 1045508
    %v216 = vsel %vm215, %v211, %v212
    %vm217 = vcmask 1043456
    %v218 = vsel %vm217, %v214, %v216
    %220 = vst [vmem:[#allocation8] sm:$0xff] %v218
    // Predicated region
    $region26: #{tpu_custom_call.1} parent=1 // pred_check
      _
    $region27: #{tpu_custom_call.1} parent=1 // pred_check_branch
      %222 = sbr.rel (0) target = $region29
    $region28: #{tpu_custom_call.1} parent=1 // pred_region
      %224 = vsyncadd [#allocation4], 0
      %s226 = sshll.u32 [#allocation8], 4
      %s227 = int_to_ptr.vmem [resolvable:$true] %s226
      %s228 = sshll.u32 %s3, 4
      %s229 = int_to_ptr.hbm [resolvable:$true] %s228
      %231 = dma.vmem_to_hbm [thread:$0]  %s227, 128, %s229, [#allocation4]
    $region29: #{tpu_custom_call.1} parent=1 // pred_fallthru
      _
    // Predicated region
    $region30: #{tpu_custom_call.1} parent=1 // pred_check
      _
    $region31: #{tpu_custom_call.1} parent=1 // pred_check_branch
      %233 = sbr.rel (0) target = $region33
    $region32: #{tpu_custom_call.1} parent=1 // pred_region
      %235 = dma.done [#allocation4], 128
    $region33: #{tpu_custom_call.1} parent=1 // pred_fallthru
      _
    %236 = vsyncpa [#allocation3], 1
    %237 = vsyncpa [#allocation6], 1
    %238 = vsyncpa [#allocation4], 1

</llo_original>
